<compile_context>
chip_gen: v6e
topology: v6e:2x2x1
jax: 0.10.0
libtpu: 0.0.40
codegen_flags: <defaults>
</compile_context>

<pallas_src>
import numpy as np
import jax
import jax.numpy as jnp
from jax.experimental import pallas as pl
from jax.experimental.pallas import tpu as pltpu


def _round_up(x: int, m: int) -> int:
    return ((x + m - 1) // m) * m


def _cdiv(a: int, b: int) -> int:
    return (a + b - 1) // b


def _adaptive_pool_matrix(in_size: int, out_size: int) -> np.ndarray:
    """P[i, s] = 1/len(window_i) for s in window_i, reproducing PyTorch's
    adaptive_avg_pool1d window rule: [floor(i*N/g), ceil((i+1)*N/g))."""
    P = np.zeros((out_size, in_size), dtype=np.float32)
    for i in range(out_size):
        start = (i * in_size) // out_size
        end = -((-(i + 1) * in_size) // out_size)  # ceil division
        P[i, start:end] = 1.0 / float(end - start)
    return P


def _vmem_limit_bytes() -> int:
    """Per-generation VMEM limit: ~3/4 of capacity, capped at 100 MiB.
    Falls back to a v7x-safe 48 MiB if the query is unavailable."""
    total = 64 * 1024 * 1024  # conservative default (v7x per-TensorCore VMEM)
    try:
        info = pltpu.get_tpu_info()
        cap = getattr(info, "vmem_capacity_bytes", None)
        if cap:
            total = int(cap)
    except Exception:
        pass
    return min((int(total) * 3) // 4, 100 * 1024 * 1024)


# ----------------------------------------------------------------------------
# Kernels
# ----------------------------------------------------------------------------

def _spp_single_pass_kernel(x_ref, k_ref, o_ref):
    # x_ref: (tm, HW)   k_ref: (HW, n_pad) VMEM-resident   o_ref: (tm, n_pad)
    o_ref[...] = jnp.dot(
        x_ref[...], k_ref[...], preferred_element_type=jnp.float32
    ).astype(o_ref.dtype)


def _spp_ktiled_kernel(x_ref, k_ref, o_ref, acc_ref):
    # Fallback for very large H*W: (M, K) grid, K streamed, f32 accumulator.
    prod = jnp.dot(x_ref[...], k_ref[...], preferred_element_type=jnp.float32)

    @pl.when(pl.program_id(1) == 0)
    def _():
        acc_ref[...] = prod

    @pl.when(pl.program_id(1) > 0)
    def _():
        acc_ref[...] += prod

    @pl.when(pl.program_id(1) == pl.num_programs(1) - 1)
    def _():
        o_ref[...] = acc_ref[...].astype(o_ref.dtype)


# ----------------------------------------------------------------------------
# Driver
# ----------------------------------------------------------------------------

def _fused_pool_matmul(x2d: jnp.ndarray, k_np: np.ndarray) -> jnp.ndarray:
    """x2d: (B*C, H*W), k_np: numpy (H*W, N) -> (B*C, N) pooled outputs."""
    BC, HW = x2d.shape
    N = k_np.shape[1]
    dtype = x2d.dtype
    itemsize = jnp.dtype(dtype).itemsize
    sub = max(8, 32 // itemsize)          # sublane packing (8 f32 / 16 bf16)
    n_pad = _round_up(N, 128)             # lane-dense, unmasked output stores

    vmem_limit = _vmem_limit_bytes()
    budget = (vmem_limit * 4) // 5        # leave headroom inside the limit
    elems = budget // itemsize

    # Pooling operator padded & packed host-side (free: it is a constant).
    k_host = np.zeros((HW, n_pad), dtype=np.float32)
    k_host[:, :N] = k_np
    k_pad = jnp.asarray(k_host, dtype=dtype)

    bc_al = _round_up(BC, sub)

    # Rows of x that fit per block with K fully VMEM-resident
    # (double-buffered x + out, 2 buffers assumed for K as well).
    rows_fit = (elems - 2 * HW * n_pad) // (2 * (HW + n_pad))

    def _params(sem):
        return pltpu.CompilerParams(
            dimension_semantics=sem, vmem_limit_bytes=vmem_limit)

    if rows_fit >= min(sub, BC):
        # -------- single-pass path (common case) --------
        if BC <= sub:
            tm = BC                        # full-dim block, no partial block
        else:
            tm = min(1024, bc_al, (rows_fit // sub) * sub)
            # Ensure >= 2 M-blocks when possible so both v7x TCs get work.
            if tm >= bc_al and bc_al >= 2 * sub:
                tm = _round_up(_cdiv(bc_al, 2), sub)
        mt = _cdiv(BC, tm)
        m_out = mt * tm                    # padded output rows; sliced off below

        cost = pl.CostEstimate(
            flops=2 * BC * HW * n_pad,
            transcendentals=0,
            bytes_accessed=(BC * HW + HW * n_pad + m_out * n_pad) * itemsize)

        out = pl.pallas_call(
            _spp_single_pass_kernel,
            out_shape=jax.ShapeDtypeStruct((m_out, n_pad), dtype),
            grid_spec=pltpu.PrefetchScalarGridSpec(
                num_scalar_prefetch=0,
                grid=(mt,),
                in_specs=[
                    pl.BlockSpec((tm, HW), lambda i: (i, 0)),
                    pl.BlockSpec((HW, n_pad), lambda i: (0, 0)),  # resident K
                ],
                out_specs=pl.BlockSpec((tm, n_pad), lambda i: (i, 0)),
            ),
            compiler_params=_params(("parallel",)),
            cost_estimate=cost,
        )(x2d, k_pad)
        return out[:BC, :N]

    # -------- K-tiled fallback (very large H*W) --------
    tm = min(512, bc_al)
    if tm >= bc_al and bc_al >= 2 * sub:
        tm = _round_up(_cdiv(bc_al, 2), sub)
    # Per-step VMEM: 2*tm*tk + 2*tk*n_pad inputs, 2*tm*n_pad out, tm*n_pad f32 acc.
    avail = elems - 2 * tm * n_pad - (tm * n_pad * 4) // itemsize
    tk = (avail // (2 * (tm + n_pad))) // 128 * 128
    tk = max(128, min(tk, 4096))

    bc_pad = _round_up(BC, tm)
    hw_pad = _round_up(HW, tk)
    x_p = x2d
    if bc_pad != BC or hw_pad != HW:
        x_p = jnp.pad(x2d, ((0, bc_pad - BC), (0, hw_pad - HW)))
    if hw_pad != HW:
        k_pad = jnp.pad(k_pad, ((0, hw_pad - HW), (0, 0)))
    mt, kt = bc_pad // tm, hw_pad // tk

    cost = pl.CostEstimate(
        flops=2 * bc_pad * hw_pad * n_pad,
        transcendentals=0,
        bytes_accessed=(bc_pad * hw_pad + mt * hw_pad * n_pad
                        + bc_pad * n_pad) * itemsize)

    out = pl.pallas_call(
        _spp_ktiled_kernel,
        out_shape=jax.ShapeDtypeStruct((bc_pad, n_pad), dtype),
        grid_spec=pltpu.PrefetchScalarGridSpec(
            num_scalar_prefetch=0,
            grid=(mt, kt),
            in_specs=[
                pl.BlockSpec((tm, tk), lambda i, k: (i, k)),
                pl.BlockSpec((tk, n_pad), lambda i, k: (k, 0)),
            ],
            out_specs=pl.BlockSpec((tm, n_pad), lambda i, k: (i, 0)),
            scratch_shapes=[pltpu.VMEM((tm, n_pad), jnp.float32)],
        ),
        compiler_params=_params(("parallel", "arbitrary")),
        cost_estimate=cost,
    )(x_p, k_pad)
    return out[:BC, :N]


def spatial_pyramid_pooling(x: jnp.ndarray, grid_size_list, flatten: bool = True):
    """JAX/Pallas equivalent of SpatialPyramidPooling.forward (no-upsample path).

    x: (B, C, H, W).  Returns (B, sum(C*g*g), 1, 1) when flatten=True.
    """
    B, C, H, W = x.shape
    x2d = x.reshape(B * C, H * W)  # glue reshape (plain JAX)

    # Build one fused pooling operator for ALL pyramid levels (numpy constant).
    k_blocks = []
    offsets = []
    off = 0
    for g in grid_size_list:
        ph = _adaptive_pool_matrix(H, g)          # (g, H)
        pw = _adaptive_pool_matrix(W, g)          # (g, W)
        # K_g[h*W+w, i*g+j] = Ph[i,h] * Pw[j,w]
        k_blocks.append(np.kron(ph, pw).T)        # (H*W, g*g)
        offsets.append(off)
        off += g * g
    k_full = np.concatenate(k_blocks, axis=1)     # (H*W, sum g*g), f32

    pooled2d = _fused_pool_matmul(x2d, k_full)    # (B*C, sum g*g)

    pooled_outputs = []
    for g, o in zip(grid_size_list, offsets):
        blk = pooled2d[:, o:o + g * g]
        if flatten:
            pooled_outputs.append(blk.reshape(B, C * g * g, 1, 1))
        else:
            pooled_outputs.append(blk.reshape(B, C, g, g))
    return jnp.concatenate(pooled_outputs, axis=1)


def _reference_spp(x, grid_size_list):
    """Pure-JAX reference (valid because H, W are divisible by each grid size)."""
    B, C, H, W = x.shape
    outs = []
    for g in grid_size_list:
        xr = x.reshape(B, C, g, H // g, g, W // g)
        pooled = xr.mean(axis=(3, 5))                 # (B, C, g, g)
        outs.append(pooled.reshape(B, C * g * g, 1, 1))
    return jnp.concatenate(outs, axis=1)


if __name__ == "__main__":
    key = jax.random.PRNGKey(0)
    B, C, H, W = 2, 4, 16, 16
    grid_size_list = [1, 2, 4]

    x = jax.random.normal(key, (B, C, H, W), dtype=jnp.float32)

    out = spatial_pyramid_pooling(x, grid_size_list, flatten=True)
    out = jax.block_until_ready(out)

    expected_channels = C * sum(g * g for g in grid_size_list)
    assert out.shape == (B, expected_channels, 1, 1), out.shape

    ref = jax.block_until_ready(_reference_spp(x, grid_size_list))
    np.testing.assert_allclose(np.asarray(out), np.asarray(ref), rtol=1e-5, atol=1e-5)

    print("KERNEL_OK")
</pallas_src>

<mosaic_0001>
module attributes {stable_mosaic.version = 11 : i64} {
  func.func @_spp_single_pass_kernel(%arg0: i32, %arg1: memref<8x256xf32, #tpu.memory_space<vmem>>, %arg2: memref<256x128xf32, #tpu.memory_space<vmem>>, %arg3: memref<8x128xf32, #tpu.memory_space<vmem>>) attributes {dimension_semantics = [#tpu.dimension_semantics<parallel>], iteration_bounds = array<i64: 1>, scalar_prefetch = 0 : i64, scratch_operands = 0 : i64, tpu.core_type = #tpu.core_type<tc>, window_params = [{transform_indices = @transform_0, window_bounds = array<i64: 8, 256>}, {pipeline_mode = #tpu.pipeline_mode<synchronous>, transform_indices = @transform_1, window_bounds = array<i64: 256, 128>}, {transform_indices = @transform_2, window_bounds = array<i64: 8, 128>}]} {
    %c0 = arith.constant 0 : index
    %c0_0 = arith.constant 0 : index
    %0 = vector.load %arg1[%c0, %c0_0] : memref<8x256xf32, #tpu.memory_space<vmem>>, vector<8x256xf32>
    %c0_1 = arith.constant 0 : index
    %c0_2 = arith.constant 0 : index
    %1 = vector.load %arg2[%c0_1, %c0_2] : memref<256x128xf32, #tpu.memory_space<vmem>>, vector<256x128xf32>
    %cst = arith.constant dense<0.000000e+00> : vector<8x128xf32>
    %2 = tpu.matmul %0, %1, %cst {dimension_numbers = #tpu.dot_dimension_numbers<[1], [0], [0], [1], [0, 0, 1, 1], [], []>} : vector<8x256xf32>, vector<256x128xf32>, vector<8x128xf32> -> vector<8x128xf32>
    %c0_3 = arith.constant 0 : index
    %c0_4 = arith.constant 0 : index
    %3 = vector.load %arg3[%c0_3, %c0_4] : memref<8x128xf32, #tpu.memory_space<vmem>>, vector<8x128xf32>
    tpu.vector_store %arg3[%c0_3, %c0_4], %2 {strides = array<i32>} : memref<8x128xf32, #tpu.memory_space<vmem>>, vector<8x128xf32>,
    return
  }
  func.func @transform_0(%arg0: i32) -> (i32, i32) {
    %c0_i32 = arith.constant 0 : i32
    %c0_i32_0 = arith.constant 0 : i32
    return %arg0, %c0_i32 : i32, i32
  }
  func.func @transform_1(%arg0: i32) -> (i32, i32) {
    %c0_i32 = arith.constant 0 : i32
    %c0_i32_0 = arith.constant 0 : i32
    %c0_i32_1 = arith.constant 0 : i32
    return %c0_i32, %c0_i32_0 : i32, i32
  }
  func.func @transform_2(%arg0: i32) -> (i32, i32) {
    %c0_i32 = arith.constant 0 : i32
    %c0_i32_0 = arith.constant 0 : i32
    return %arg0, %c0_i32 : i32, i32
  }
}

</mosaic_0001>

<llo_original>
// kernel: tpu_custom_call.1
$region0: #{tpu_custom_call.1}
  #allocation0 [shape = 'u32[]', space=smem, size = 0x4, offset = 0x4, fixed_abs, tag = 'smem constant byte address 0x4 - core index']
  #allocation1 [shape = 'u32[144,128]{1,0:T(1,128)}', space=vmem, size = 0x12000, scoped, tag = 'internal scratch']
  %s0 = inlined_call_operand.hbm [shape: f32[8,256], index: 0, kind: input, shape index: {}]
  %s1 = inlined_call_operand.hbm [shape: f32[256,128], index: 1, kind: input, shape index: {}]
  %s2 = inlined_call_operand.hbm [shape: f32[8,128], index: 2, kind: output, shape index: {}]
  %s3 = sld [smem:[#allocation0]]
  $region26: #{tpu_custom_call.1} parent=0
    _
  %s5 = ssub.s32 1, %s3
  %s6 = scalar_select 0, %s5, %s3
  $region1: #{tpu_custom_call.1} parent=0
    #allocation2 [shape = 'u8[8192]{0}', space=vmem, size = 0x2000, scoped, tag = 'input window, operand 0, single buffered']
    #allocation3 [shape = 's32[1]{0}', space=sflag, size = 0x4, scoped, tag = 'scoped memory for tpu_custom_call.1']
    #allocation4 [shape = 's32[1]{0}', space=sflag, size = 0x4, scoped, tag = 'scoped memory for tpu_custom_call.1']
    #allocation5 [shape = 'u8[131072]{0}', space=vmem, size = 0x20000, scoped, tag = 'input window, operand 1, single buffered']
    #allocation6 [shape = 's32[1]{0}', space=sflag, size = 0x4, scoped, tag = 'scoped memory for tpu_custom_call.1']
    #allocation7 [shape = 'u8[4096]{0}', space=vmem, size = 0x1000, scoped, tag = 'output window, operand 0, single buffered']
    %7 = vsyncpa [#allocation3], 0
    %8 = vsyncpa [#allocation6], 0
    %9 = vsyncpa [#allocation4], 0
    // Predicated region
    $region2: #{tpu_custom_call.1} parent=1 // pred_check
      _
    $region3: #{tpu_custom_call.1} parent=1 // pred_check_branch
      %11 = sbr.rel (0) target = $region5
    $region4: #{tpu_custom_call.1} parent=1 // pred_region
      %s13 = ssub.s32 256, 256
      %14 = vsyncadd [#allocation3], %s13
      %s16 = sshll.u32 [#allocation2], 4
      %s17 = int_to_ptr.vmem [resolvable:$true] %s16
      %19 = dma.hbm_to_vmem [thread:$0]  %s0, 256, %s17, [#allocation3]
    $region5: #{tpu_custom_call.1} parent=1 // pred_fallthru
      _
    // Predicated region
    $region6: #{tpu_custom_call.1} parent=1 // pred_check
      _
    $region7: #{tpu_custom_call.1} parent=1 // pred_check_branch
      %21 = sbr.rel (0) target = $region9
    $region8: #{tpu_custom_call.1} parent=1 // pred_region
      %s23 = ssub.s32 4096, 4096
      %24 = vsyncadd [#allocation6], %s23
      %s25 = sshll.u32 [#allocation5], 4
      %s26 = int_to_ptr.vmem [resolvable:$true] %s25
      %31 = dma.hbm_to_vmem [thread:$0]  %s1, 4096, %s26, [#allocation6], 128, 128, 8
    $region9: #{tpu_custom_call.1} parent=1 // pred_fallthru
      _
    // Predicated region
    $region10: #{tpu_custom_call.1} parent=1 // pred_check
      _
    $region11: #{tpu_custom_call.1} parent=1 // pred_check_branch
      %33 = sbr.rel (0) target = $region13
    $region12: #{tpu_custom_call.1} parent=1 // pred_region
      %34 = dma.done [#allocation3], 256
    $region13: #{tpu_custom_call.1} parent=1 // pred_fallthru
      _
    // Predicated region
    $region14: #{tpu_custom_call.1} parent=1 // pred_check
      _
    $region15: #{tpu_custom_call.1} parent=1 // pred_check_branch
      %36 = sbr.rel (0) target = $region17
    $region16: #{tpu_custom_call.1} parent=1 // pred_region
      %37 = dma.done [#allocation6], 4096
    $region17: #{tpu_custom_call.1} parent=1 // pred_fallthru
      _
    %v38 = vld [vmem:[#allocation2] sm:$0xff]
    %v39 = vld [vmem:[#allocation2 + $0x8] sm:$0xff]
    %v40 = vld [vmem:[#allocation5] sm:$0xff]
    %v41 = vld [vmem:[#allocation5 + $0x8] sm:$0xff]
    %v42 = vld [vmem:[#allocation5 + $0x10] sm:$0xff]
    %v43 = vld [vmem:[#allocation5 + $0x18] sm:$0xff]
    %v44 = vld [vmem:[#allocation5 + $0x20] sm:$0xff]
    %v45 = vld [vmem:[#allocation5 + $0x28] sm:$0xff]
    %v46 = vld [vmem:[#allocation5 + $0x30] sm:$0xff]
    %v47 = vld [vmem:[#allocation5 + $0x38] sm:$0xff]
    %v48 = vld [vmem:[#allocation5 + $0x40] sm:$0xff]
    %v49 = vld [vmem:[#allocation5 + $0x48] sm:$0xff]
    %v50 = vld [vmem:[#allocation5 + $0x50] sm:$0xff]
    %v51 = vld [vmem:[#allocation5 + $0x58] sm:$0xff]
    %v52 = vld [vmem:[#allocation5 + $0x60] sm:$0xff]
    %v53 = vld [vmem:[#allocation5 + $0x68] sm:$0xff]
    %v54 = vld [vmem:[#allocation5 + $0x70] sm:$0xff]
    %v55 = vld [vmem:[#allocation5 + $0x78] sm:$0xff]
    %v56 = vld [vmem:[#allocation5 + $0x80] sm:$0xff]
    %v57 = vld [vmem:[#allocation5 + $0x88] sm:$0xff]
    %v58 = vld [vmem:[#allocation5 + $0x90] sm:$0xff]
    %v59 = vld [vmem:[#allocation5 + $0x98] sm:$0xff]
    %v60 = vld [vmem:[#allocation5 + $0xa0] sm:$0xff]
    %v61 = vld [vmem:[#allocation5 + $0xa8] sm:$0xff]
    %v62 = vld [vmem:[#allocation5 + $0xb0] sm:$0xff]
    %v63 = vld [vmem:[#allocation5 + $0xb8] sm:$0xff]
    %v64 = vld [vmem:[#allocation5 + $0xc0] sm:$0xff]
    %v65 = vld [vmem:[#allocation5 + $0xc8] sm:$0xff]
    %v66 = vld [vmem:[#allocation5 + $0xd0] sm:$0xff]
    %v67 = vld [vmem:[#allocation5 + $0xd8] sm:$0xff]
    %v68 = vld [vmem:[#allocation5 + $0xe0] sm:$0xff]
    %v69 = vld [vmem:[#allocation5 + $0xe8] sm:$0xff]
    %v70 = vld [vmem:[#allocation5 + $0xf0] sm:$0xff]
    %v71 = vld [vmem:[#allocation5 + $0xf8] sm:$0xff]
    %72 = vmatprep.subr.mxu0 0.0
    %73 = vmatpush1.msra.mxu0 %v55
    %74 = vmatprep.subr.mxu0 0.0
    %75 = vmatpush1.msra.mxu0 %v54
    %76 = vmatprep.subr.mxu0 0.0
    %77 = vmatpush1.msra.mxu0 %v53
    %78 = vmatprep.subr.mxu0 0.0
    %79 = vmatpush1.msra.mxu0 %v52
    %80 = vmatprep.subr.mxu0 0.0
    %81 = vmatpush1.msra.mxu0 %v51
    %82 = vmatprep.subr.mxu0 0.0
    %83 = vmatpush1.msra.mxu0 %v50
    %84 = vmatprep.subr.mxu0 0.0
    %85 = vmatpush1.msra.mxu0 %v49
    %86 = vmatprep.subr.mxu0 0.0
    %87 = vmatpush1.msra.mxu0 %v48
    %88 = vmatprep.subr.mxu0 0.0
    %89 = vmatpush1.msra.mxu0 %v47
    %90 = vmatprep.subr.mxu0 0.0
    %91 = vmatpush1.msra.mxu0 %v46
    %92 = vmatprep.subr.mxu0 0.0
    %93 = vmatpush1.msra.mxu0 %v45
    %94 = vmatprep.subr.mxu0 0.0
    %95 = vmatpush1.msra.mxu0 %v44
    %96 = vmatprep.subr.mxu0 0.0
    %97 = vmatpush1.msra.mxu0 %v43
    %98 = vmatprep.subr.mxu0 0.0
    %99 = vmatpush1.msra.mxu0 %v42
    %100 = vmatprep.subr.mxu0 0.0
    %101 = vmatpush1.msra.mxu0 %v41
    %102 = vmatprep.subr.mxu0 0.0
    %103 = vmatpush1.msra.mxu0 %v40
    %104 = vmatprep.subr.mxu0 0.0
    %105 = vmatpush2.msra.mxu0 %v71
    %106 = vmatprep.subr.mxu0 0.0
    %107 = vmatpush2.msra.mxu0 %v70
    %108 = vmatprep.subr.mxu0 0.0
    %109 = vmatpush2.msra.mxu0 %v69
    %110 = vmatprep.subr.mxu0 0.0
    %111 = vmatpush2.msra.mxu0 %v68
    %112 = vmatprep.subr.mxu0 0.0
    %113 = vmatpush2.msra.mxu0 %v67
    %114 = vmatprep.subr.mxu0 0.0
    %115 = vmatpush2.msra.mxu0 %v66
    %116 = vmatprep.subr.mxu0 0.0
    %117 = vmatpush2.msra.mxu0 %v65
    %118 = vmatprep.subr.mxu0 0.0
    %119 = vmatpush2.msra.mxu0 %v64
    %120 = vmatprep.subr.mxu0 0.0
    %121 = vmatpush2.msra.mxu0 %v63
    %122 = vmatprep.subr.mxu0 0.0
    %123 = vmatpush2.msra.mxu0 %v62
    %124 = vmatprep.subr.mxu0 0.0
    %125 = vmatpush2.msra.mxu0 %v61
    %126 = vmatprep.subr.mxu0 0.0
    %127 = vmatpush2.msra.mxu0 %v60
    %128 = vmatprep.subr.mxu0 0.0
    %129 = vmatpush2.msra.mxu0 %v59
    %130 = vmatprep.subr.mxu0 0.0
    %131 = vmatpush2.msra.mxu0 %v58
    %132 = vmatprep.subr.mxu0 0.0
    %133 = vmatpush2.msra.mxu0 %v57
    %134 = vmatprep.subr.mxu0 0.0
    %135 = vmatpush2.msra.mxu0 %v56
    %136 = vmatprep.mubr.f32.mxu0 %v39
    %137 = vmatmul.mubr.f32.gmra.mxu0 %v38
    %v138 = vpop.f32.mrf.mxu0
    %v139 = vadd.f32 0.0, %v138
    %v140 = vpop.f32.mrf.mxu0
    %141 = vdwg.mxu0
    %142 = vst [vmem:[#allocation7] sm:$0xff] %v139
    // Predicated region
    $region18: #{tpu_custom_call.1} parent=1 // pred_check
      _
    $region19: #{tpu_custom_call.1} parent=1 // pred_check_branch
      %144 = sbr.rel (0) target = $region21
    $region20: #{tpu_custom_call.1} parent=1 // pred_region
      %s146 = ssub.s32 128, 128
      %147 = vsyncadd [#allocation4], %s146
      %s149 = sshll.u32 [#allocation7], 4
      %s150 = int_to_ptr.vmem [resolvable:$true] %s149
      %152 = dma.vmem_to_hbm [thread:$0]  %s150, 128, %s2, [#allocation4]
    $region21: #{tpu_custom_call.1} parent=1 // pred_fallthru
      _
    // Predicated region
    $region22: #{tpu_custom_call.1} parent=1 // pred_check
      _
    $region23: #{tpu_custom_call.1} parent=1 // pred_check_branch
      %154 = sbr.rel (0) target = $region25
    $region24: #{tpu_custom_call.1} parent=1 // pred_region
      %155 = dma.done [#allocation4], 128
    $region25: #{tpu_custom_call.1} parent=1 // pred_fallthru
      _
    %156 = vsyncpa [#allocation3], 1
    %157 = vsyncpa [#allocation6], 1
    %158 = vsyncpa [#allocation4], 1

</llo_original>
